<compile_context>
chip_gen: v7x
topology: tpu7x:2x2x1
jax: 0.10.0
libtpu: 0.0.40
codegen_flags: <defaults>
</compile_context>

<pallas_src>
import functools

import jax
import jax.numpy as jnp
from jax.experimental import pallas as pl
from jax.experimental.pallas import tpu as pltpu


def _sigmoid(x):
    # 1 / (1 + exp(-x)); exp -> EUP, approx reciprocal -> EUP (free slot),
    # instead of a VALU-bound f32 divide.
    return pl.reciprocal(1.0 + jnp.exp(-x), approx=True)


def logistic_mlp_kernel(x_ref, w1_ref, b1_ref, w2_ref, b2_ref, w3_ref, b3_ref,
                        y_ref):
    x = x_ref[...]                                                    # (8, TB)
    h1 = _sigmoid(
        jnp.dot(w1_ref[...], x, preferred_element_type=jnp.float32)
        + b1_ref[...])                                                # (50, TB)
    h2 = _sigmoid(
        jnp.dot(w2_ref[...], h1, preferred_element_type=jnp.float32)
        + b2_ref[...])                                                # (10, TB)
    y = _sigmoid(
        jnp.dot(w3_ref[...], h2, preferred_element_type=jnp.float32)
        + b3_ref[...])                                                # (1, TB)
    y_ref[...] = y.astype(y_ref.dtype)


def _round_up(n, m):
    return ((n + m - 1) // m) * m


@functools.partial(jax.jit, static_argnames=("block_batch",))
def logistic_model_forward(x, params, *, block_batch=8192):
    """x: (B, 8) float32.

    params: dict with w1,b1,w2,b2,w3,b3; weights in PyTorch (out, in) layout,
    biases as (out, 1) columns.
    Note: for tiny batches plain XLA fusion beats the pallas_call launch cost;
    the kernel pays off for large B.
    """
    B = x.shape[0]
    # Batch lives on the lane axis -> tile must be a multiple of 128.
    tb = min(block_batch, _round_up(B, 128))
    b_pad = _round_up(B, tb)
    grid = (b_pad // tb,)

    # Layout plumbing (once, in the wrapper): batch-minor + pad to tile multiple.
    xt = jnp.pad(x.T, ((0, 0), (0, b_pad - B)))                       # (8, b_pad)

    const = lambda i: (0, 0)  # parameters: same VMEM-resident block every step
    cost = pl.CostEstimate(
        flops=2 * b_pad * (8 * 50 + 50 * 10 + 10 * 1),
        transcendentals=61 * b_pad,
        bytes_accessed=36 * b_pad + 4 * (50 * 8 + 50 + 10 * 50 + 10 + 10 + 1),
    )

    y_pad = pl.pallas_call(
        logistic_mlp_kernel,
        out_shape=jax.ShapeDtypeStruct((1, b_pad), jnp.float32),
        grid=grid,
        in_specs=[
            pl.BlockSpec((8, tb), lambda i: (0, i)),      # x tile (lane-dense)
            pl.BlockSpec((50, 8), const),                 # w1
            pl.BlockSpec((50, 1), const),                 # b1
            pl.BlockSpec((10, 50), const),                # w2
            pl.BlockSpec((10, 1), const),                 # b2
            pl.BlockSpec((1, 10), const),                 # w3
            pl.BlockSpec((1, 1), const),                  # b3
        ],
        out_specs=pl.BlockSpec((1, tb), lambda i: (0, i)),
        compiler_params=pltpu.CompilerParams(
            dimension_semantics=("parallel",)),
        cost_estimate=cost,
    )(xt, params["w1"], params["b1"], params["w2"], params["b2"],
      params["w3"], params["b3"])

    return y_pad[:, :B].T                                              # (B, 1)


def init_params(key):
    """PyTorch nn.Linear-style init: U[-1/sqrt(fan_in), +1/sqrt(fan_in)].

    Weights stored (out_features, in_features) like torch; biases as (out, 1).
    """
    dims = [(8, 50), (50, 10), (10, 1)]
    params = {}
    for i, (fan_in, fan_out) in enumerate(dims, start=1):
        key, kw, kb = jax.random.split(key, 3)
        bound = 1.0 / (fan_in ** 0.5)
        params[f"w{i}"] = jax.random.uniform(
            kw, (fan_out, fan_in), jnp.float32, minval=-bound, maxval=bound)
        params[f"b{i}"] = jax.random.uniform(
            kb, (fan_out, 1), jnp.float32, minval=-bound, maxval=bound)
    return params


if __name__ == "__main__":
    key = jax.random.PRNGKey(0)
    key, kx = jax.random.split(key)

    # Small demo batch; deliberately not a multiple of 128 so the wrapper's
    # padding + multi-step grid path is exercised (block_batch=128 -> grid=(3,)).
    B = 300
    x = jax.random.normal(kx, (B, 8), jnp.float32)
    params = init_params(key)

    y = logistic_model_forward(x, params, block_batch=128)
    jax.block_until_ready(y)

    # Pure-JAX reference of the same math (PyTorch layout: y = x @ W.T + b).
    h1 = jax.nn.sigmoid(x @ params["w1"].T + params["b1"].T)
    h2 = jax.nn.sigmoid(h1 @ params["w2"].T + params["b2"].T)
    y_ref = jax.nn.sigmoid(h2 @ params["w3"].T + params["b3"].T)

    assert y.shape == (B, 1)
    # Tolerance loosened vs 1e-5 because of the EUP approximate reciprocal.
    assert jnp.allclose(y, y_ref, atol=2e-3, rtol=2e-3)

    print("KERNEL_OK")
</pallas_src>

<mosaic_0001>
module attributes {stable_mosaic.version = 11 : i64} {
  func.func @logistic_mlp_kernel(%arg0: i32, %arg1: memref<8x128xf32, #tpu.memory_space<vmem>>, %arg2: memref<50x8xf32, #tpu.memory_space<vmem>>, %arg3: memref<50x1xf32, #tpu.memory_space<vmem>>, %arg4: memref<10x50xf32, #tpu.memory_space<vmem>>, %arg5: memref<10x1xf32, #tpu.memory_space<vmem>>, %arg6: memref<1x10xf32, #tpu.memory_space<vmem>>, %arg7: memref<1x1xf32, #tpu.memory_space<vmem>>, %arg8: memref<1x128xf32, #tpu.memory_space<vmem>>) attributes {dimension_semantics = [#tpu.dimension_semantics<parallel>], iteration_bounds = array<i64: 3>, scalar_prefetch = 0 : i64, scratch_operands = 0 : i64, tpu.core_type = #tpu.core_type<tc>, window_params = [{transform_indices = @transform_0, window_bounds = array<i64: 8, 128>}, {pipeline_mode = #tpu.pipeline_mode<synchronous>, transform_indices = @transform_1, window_bounds = array<i64: 50, 8>}, {pipeline_mode = #tpu.pipeline_mode<synchronous>, transform_indices = @transform_2, window_bounds = array<i64: 50, 1>}, {pipeline_mode = #tpu.pipeline_mode<synchronous>, transform_indices = @transform_3, window_bounds = array<i64: 10, 50>}, {pipeline_mode = #tpu.pipeline_mode<synchronous>, transform_indices = @transform_4, window_bounds = array<i64: 10, 1>}, {pipeline_mode = #tpu.pipeline_mode<synchronous>, transform_indices = @transform_5, window_bounds = array<i64: 1, 10>}, {pipeline_mode = #tpu.pipeline_mode<synchronous>, transform_indices = @transform_6, window_bounds = array<i64: 1, 1>}, {transform_indices = @transform_7, window_bounds = array<i64: 1, 128>}]} {
    %c0 = arith.constant 0 : index
    %c0_0 = arith.constant 0 : index
    %0 = vector.load %arg1[%c0, %c0_0] : memref<8x128xf32, #tpu.memory_space<vmem>>, vector<8x128xf32>
    %c0_1 = arith.constant 0 : index
    %c0_2 = arith.constant 0 : index
    %1 = vector.load %arg2[%c0_1, %c0_2] : memref<50x8xf32, #tpu.memory_space<vmem>>, vector<50x8xf32>
    %cst = arith.constant dense<0.000000e+00> : vector<50x128xf32>
    %2 = tpu.matmul %1, %0, %cst {dimension_numbers = #tpu.dot_dimension_numbers<[1], [0], [0], [1], [0, 0, 1, 1], [], []>} : vector<50x8xf32>, vector<8x128xf32>, vector<50x128xf32> -> vector<50x128xf32>
    %c0_3 = arith.constant 0 : index
    %c0_4 = arith.constant 0 : index
    %3 = vector.load %arg3[%c0_3, %c0_4] : memref<50x1xf32, #tpu.memory_space<vmem>>, vector<50x1xf32>
    %4 = vector.broadcast %3 : vector<50x1xf32> to vector<50x128xf32>
    %5 = arith.addf %2, %4 : vector<50x128xf32>
    %cst_5 = arith.constant 0.000000e+00 : f32
    %6 = vector.broadcast %cst_5 : f32 to vector<50x128xf32>
    %7 = arith.subf %6, %5 : vector<50x128xf32>
    %8 = math.exp %7 : vector<50x128xf32>
    %cst_6 = arith.constant 1.000000e+00 : f32
    %9 = vector.broadcast %cst_6 : f32 to vector<50x128xf32>
    %10 = arith.addf %9, %8 : vector<50x128xf32>
    %11 = tpu.reciprocal %10 {approx = true} : vector<50x128xf32> -> vector<50x128xf32>
    %c0_7 = arith.constant 0 : index
    %c0_8 = arith.constant 0 : index
    %12 = vector.load %arg4[%c0_7, %c0_8] : memref<10x50xf32, #tpu.memory_space<vmem>>, vector<10x50xf32>
    %cst_9 = arith.constant dense<0.000000e+00> : vector<10x128xf32>
    %13 = tpu.matmul %12, %11, %cst_9 {dimension_numbers = #tpu.dot_dimension_numbers<[1], [0], [0], [1], [0, 0, 1, 1], [], []>} : vector<10x50xf32>, vector<50x128xf32>, vector<10x128xf32> -> vector<10x128xf32>
    %c0_10 = arith.constant 0 : index
    %c0_11 = arith.constant 0 : index
    %14 = vector.load %arg5[%c0_10, %c0_11] : memref<10x1xf32, #tpu.memory_space<vmem>>, vector<10x1xf32>
    %15 = vector.broadcast %14 : vector<10x1xf32> to vector<10x128xf32>
    %16 = arith.addf %13, %15 : vector<10x128xf32>
    %cst_12 = arith.constant 0.000000e+00 : f32
    %17 = vector.broadcast %cst_12 : f32 to vector<10x128xf32>
    %18 = arith.subf %17, %16 : vector<10x128xf32>
    %19 = math.exp %18 : vector<10x128xf32>
    %cst_13 = arith.constant 1.000000e+00 : f32
    %20 = vector.broadcast %cst_13 : f32 to vector<10x128xf32>
    %21 = arith.addf %20, %19 : vector<10x128xf32>
    %22 = tpu.reciprocal %21 {approx = true} : vector<10x128xf32> -> vector<10x128xf32>
    %c0_14 = arith.constant 0 : index
    %c0_15 = arith.constant 0 : index
    %23 = vector.load %arg6[%c0_14, %c0_15] : memref<1x10xf32, #tpu.memory_space<vmem>>, vector<1x10xf32>
    %cst_16 = arith.constant dense<0.000000e+00> : vector<1x128xf32>
    %24 = tpu.matmul %23, %22, %cst_16 {dimension_numbers = #tpu.dot_dimension_numbers<[1], [0], [0], [1], [0, 0, 1, 1], [], []>} : vector<1x10xf32>, vector<10x128xf32>, vector<1x128xf32> -> vector<1x128xf32>
    %c0_17 = arith.constant 0 : index
    %c0_18 = arith.constant 0 : index
    %25 = vector.load %arg7[%c0_17, %c0_18] : memref<1x1xf32, #tpu.memory_space<vmem>>, vector<1x1xf32>
    %26 = vector.broadcast %25 : vector<1x1xf32> to vector<1x128xf32>
    %27 = arith.addf %24, %26 : vector<1x128xf32>
    %cst_19 = arith.constant 0.000000e+00 : f32
    %28 = vector.broadcast %cst_19 : f32 to vector<1x128xf32>
    %29 = arith.subf %28, %27 : vector<1x128xf32>
    %30 = math.exp %29 : vector<1x128xf32>
    %cst_20 = arith.constant 1.000000e+00 : f32
    %31 = vector.broadcast %cst_20 : f32 to vector<1x128xf32>
    %32 = arith.addf %31, %30 : vector<1x128xf32>
    %33 = tpu.reciprocal %32 {approx = true} : vector<1x128xf32> -> vector<1x128xf32>
    %c0_21 = arith.constant 0 : index
    %c0_22 = arith.constant 0 : index
    %34 = vector.load %arg8[%c0_21, %c0_22] : memref<1x128xf32, #tpu.memory_space<vmem>>, vector<1x128xf32>
    tpu.vector_store %arg8[%c0_21, %c0_22], %33 {strides = array<i32>} : memref<1x128xf32, #tpu.memory_space<vmem>>, vector<1x128xf32>,
    return
  }
  func.func @transform_0(%arg0: i32) -> (i32, i32) {
    %c0_i32 = arith.constant 0 : i32
    %c0_i32_0 = arith.constant 0 : i32
    return %c0_i32, %arg0 : i32, i32
  }
  func.func @transform_1(%arg0: i32) -> (i32, i32) {
    %c0_i32 = arith.constant 0 : i32
    %c0_i32_0 = arith.constant 0 : i32
    %c0_i32_1 = arith.constant 0 : i32
    return %c0_i32, %c0_i32_0 : i32, i32
  }
  func.func @transform_2(%arg0: i32) -> (i32, i32) {
    %c0_i32 = arith.constant 0 : i32
    %c0_i32_0 = arith.constant 0 : i32
    %c0_i32_1 = arith.constant 0 : i32
    return %c0_i32, %c0_i32_0 : i32, i32
  }
  func.func @transform_3(%arg0: i32) -> (i32, i32) {
    %c0_i32 = arith.constant 0 : i32
    %c0_i32_0 = arith.constant 0 : i32
    %c0_i32_1 = arith.constant 0 : i32
    return %c0_i32, %c0_i32_0 : i32, i32
  }
  func.func @transform_4(%arg0: i32) -> (i32, i32) {
    %c0_i32 = arith.constant 0 : i32
    %c0_i32_0 = arith.constant 0 : i32
    %c0_i32_1 = arith.constant 0 : i32
    return %c0_i32, %c0_i32_0 : i32, i32
  }
  func.func @transform_5(%arg0: i32) -> (i32, i32) {
    %c0_i32 = arith.constant 0 : i32
    %c0_i32_0 = arith.constant 0 : i32
    %c0_i32_1 = arith.constant 0 : i32
    return %c0_i32, %c0_i32_0 : i32, i32
  }
  func.func @transform_6(%arg0: i32) -> (i32, i32) {
    %c0_i32 = arith.constant 0 : i32
    %c0_i32_0 = arith.constant 0 : i32
    %c0_i32_1 = arith.constant 0 : i32
    return %c0_i32, %c0_i32_0 : i32, i32
  }
  func.func @transform_7(%arg0: i32) -> (i32, i32) {
    %c0_i32 = arith.constant 0 : i32
    %c0_i32_0 = arith.constant 0 : i32
    return %c0_i32, %arg0 : i32, i32
  }
}

</mosaic_0001>

<llo_original>
// kernel: logistic_model_forward.1
$region0: #{logistic_model_forward.1}
  #allocation0 [shape = 'u32[]', space=smem, size = 0x4, offset = 0x4, fixed_abs, tag = 'smem constant byte address 0x4 - core index']
  #allocation1 [shape = 'u32[144,128]{1,0:T(1,128)}', space=vmem, size = 0x12000, scoped, tag = 'internal scratch']
  #allocation2 [shape = 'f32[1,1]{1,0:T(1,128)S(1)}', space=vmem, size = 0x200, scoped, tag = 'scoped memory for logistic_model_forward.1']
  %s0 = inlined_call_operand.vmem [shape: f32[8,384], index: 0, kind: input, shape index: {}]
  %s1 = inlined_call_operand.vmem [shape: f32[50,8], index: 1, kind: input, shape index: {}]
  %s2 = inlined_call_operand.vmem [shape: f32[50,1], index: 2, kind: input, shape index: {}]
  %s3 = inlined_call_operand.vmem [shape: f32[10,50], index: 3, kind: input, shape index: {}]
  %s4 = inlined_call_operand.vmem [shape: f32[10,1], index: 4, kind: input, shape index: {}]
  %s5 = inlined_call_operand.vmem [shape: f32[1,10], index: 5, kind: input, shape index: {}]
  %s6 = inlined_call_operand.<no memory space> [shape: f32[1,1], index: 6, kind: input, shape index: {}]
  %s7 = inlined_call_operand.vmem [shape: f32[1,384], index: 7, kind: output, shape index: {}]
  %s8 = sld [smem:[#allocation0]]
  $region61: #{logistic_model_forward.1} parent=0
    _
  %s10 = ssub.s32 1, %s8
  %s11 = scalar_select 0, %s10, %s8
  %v12 = vstv %s6
  %13 = vst [vmem:[#allocation2] sm:$0x1] %v12
  loop: start=0, step=1, limit=5
  $region2: #{logistic_model_forward.1} parent=0 // loop_pre_header
    _
  $region3: #{logistic_model_forward.1} parent=0 // loop_header
    %s15 = sphi 0, %s19
    %p16 = scmp.ge.s32.totalorder %s15, 5
    %s25 = sphi 0, %s27
    %s28 = sphi 0, %s25
    %s29 = sphi 0, %s28
    %s45 = sphi 0, %s29
    %s49 = sphi 0, %s49
    %s51 = sphi 0, %s49
    %s52 = sphi 0, %s51
    %s66 = sphi 0, %s52
    %s70 = sphi 0, %s70
    %s72 = sphi 0, %s70
    %s73 = sphi 0, %s72
    %s87 = sphi 0, %s73
    %s91 = sphi 0, %s91
    %s93 = sphi 0, %s91
    %s94 = sphi 0, %s93
    %s108 = sphi 0, %s94
    %s112 = sphi 0, %s112
    %s114 = sphi 0, %s112
    %s115 = sphi 0, %s114
    %s129 = sphi 0, %s115
    %s133 = sphi 0, %s133
    %s135 = sphi 0, %s133
    %s136 = sphi 0, %s135
    %s150 = sphi 0, %s136
    %s154 = sphi 0, %s154
    %s156 = sphi 0, %s154
    %s157 = sphi 0, %s156
    %s171 = sphi 0, %s157
    %s177 = sphi 0, %s179
    %s180 = sphi 0, %s177
    %s181 = sphi 0, %s180
    %s197 = sphi 0, %s181
  $region4: #{logistic_model_forward.1} parent=0 // loop_header_branch
    %18 = sbr.rel (%p16) target = $region8
  $region5: #{logistic_model_forward.1} parent=0 // loop_body
    %s20 = ssub.s32 %s15, 1
    %s21 = ssub.s32 %s15, 2
    %s22 = sadd.s32 %s15, 1
    %s23 = ssub.s32 %s15, %s22
    %p24 = scmp.eq.s32.totalorder %s23, 0
    %s26 = sadd.s32 %s25, 1
    %s27 = scalar_select %p24, %s25, %s26
    %p30 = pneg %p24
    %p31 = scmp.eq.s32.totalorder %s15, 2
    %p32 = por %p30, %p31
    %p33 = scmp.ne.s32.totalorder %s25, %s28
    %p34 = scmp.eq.s32.totalorder %s15, 0
    %p35 = por %p33, %p34
    %p36 = scmp.ne.s32.totalorder %s25, %s28
    %p37 = scmp.eq.s32.totalorder %s20, 2
    %p38 = por %p36, %p37
    %p39 = scmp.ne.s32.totalorder %s28, %s29
    %p40 = scmp.eq.s32.totalorder %s20, 0
    %p41 = por %p39, %p40
    %p42 = scmp.ne.s32.totalorder %s28, %s29
    %p43 = scmp.eq.s32.totalorder %s21, 2
    %p44 = por %p42, %p43
    %p46 = scmp.ne.s32.totalorder %s29, %s45
    %p47 = scmp.eq.s32.totalorder %s21, 0
    %p48 = por %p46, %p47
    %s50 = sadd.s32 %s49, 1
    %p53 = scmp.eq.s32.totalorder %s15, 2
    %p54 = scmp.ne.s32.totalorder %s49, %s51
    %p55 = scmp.eq.s32.totalorder %s15, 0
    %p56 = por %p54, %p55
    %p57 = scmp.ne.s32.totalorder %s49, %s51
    %p58 = scmp.eq.s32.totalorder %s20, 2
    %p59 = por %p57, %p58
    %p60 = scmp.ne.s32.totalorder %s51, %s52
    %p61 = scmp.eq.s32.totalorder %s20, 0
    %p62 = por %p60, %p61
    %p63 = scmp.ne.s32.totalorder %s51, %s52
    %p64 = scmp.eq.s32.totalorder %s21, 2
    %p65 = por %p63, %p64
    %p67 = scmp.ne.s32.totalorder %s52, %s66
    %p68 = scmp.eq.s32.totalorder %s21, 0
    %p69 = por %p67, %p68
    %s71 = sadd.s32 %s70, 1
    %p74 = scmp.eq.s32.totalorder %s15, 2
    %p75 = scmp.ne.s32.totalorder %s70, %s72
    %p76 = scmp.eq.s32.totalorder %s15, 0
    %p77 = por %p75, %p76
    %p78 = scmp.ne.s32.totalorder %s70, %s72
    %p79 = scmp.eq.s32.totalorder %s20, 2
    %p80 = por %p78, %p79
    %p81 = scmp.ne.s32.totalorder %s72, %s73
    %p82 = scmp.eq.s32.totalorder %s20, 0
    %p83 = por %p81, %p82
    %p84 = scmp.ne.s32.totalorder %s72, %s73
    %p85 = scmp.eq.s32.totalorder %s21, 2
    %p86 = por %p84, %p85
    %p88 = scmp.ne.s32.totalorder %s73, %s87
    %p89 = scmp.eq.s32.totalorder %s21, 0
    %p90 = por %p88, %p89
    %s92 = sadd.s32 %s91, 1
    %p95 = scmp.eq.s32.totalorder %s15, 2
    %p96 = scmp.ne.s32.totalorder %s91, %s93
    %p97 = scmp.eq.s32.totalorder %s15, 0
    %p98 = por %p96, %p97
    %p99 = scmp.ne.s32.totalorder %s91, %s93
    %p100 = scmp.eq.s32.totalorder %s20, 2
    %p101 = por %p99, %p100
    %p102 = scmp.ne.s32.totalorder %s93, %s94
    %p103 = scmp.eq.s32.totalorder %s20, 0
    %p104 = por %p102, %p103
    %p105 = scmp.ne.s32.totalorder %s93, %s94
    %p106 = scmp.eq.s32.totalorder %s21, 2
    %p107 = por %p105, %p106
    %p109 = scmp.ne.s32.totalorder %s94, %s108
    %p110 = scmp.eq.s32.totalorder %s21, 0
    %p111 = por %p109, %p110
    %s113 = sadd.s32 %s112, 1
    %p116 = scmp.eq.s32.totalorder %s15, 2
    %p117 = scmp.ne.s32.totalorder %s112, %s114
    %p118 = scmp.eq.s32.totalorder %s15, 0
    %p119 = por %p117, %p118
    %p120 = scmp.ne.s32.totalorder %s112, %s114
    %p121 = scmp.eq.s32.totalorder %s20, 2
    %p122 = por %p120, %p121
    %p123 = scmp.ne.s32.totalorder %s114, %s115
    %p124 = scmp.eq.s32.totalorder %s20, 0
    %p125 = por %p123, %p124
    %p126 = scmp.ne.s32.totalorder %s114, %s115
    %p127 = scmp.eq.s32.totalorder %s21, 2
    %p128 = por %p126, %p127
    %p130 = scmp.ne.s32.totalorder %s115, %s129
    %p131 = scmp.eq.s32.totalorder %s21, 0
    %p132 = por %p130, %p131
    %s134 = sadd.s32 %s133, 1
    %p137 = scmp.eq.s32.totalorder %s15, 2
    %p138 = scmp.ne.s32.totalorder %s133, %s135
    %p139 = scmp.eq.s32.totalorder %s15, 0
    %p140 = por %p138, %p139
    %p141 = scmp.ne.s32.totalorder %s133, %s135
    %p142 = scmp.eq.s32.totalorder %s20, 2
    %p143 = por %p141, %p142
    %p144 = scmp.ne.s32.totalorder %s135, %s136
    %p145 = scmp.eq.s32.totalorder %s20, 0
    %p146 = por %p144, %p145
    %p147 = scmp.ne.s32.totalorder %s135, %s136
    %p148 = scmp.eq.s32.totalorder %s21, 2
    %p149 = por %p147, %p148
    %p151 = scmp.ne.s32.totalorder %s136, %s150
    %p152 = scmp.eq.s32.totalorder %s21, 0
    %p153 = por %p151, %p152
    %s155 = sadd.s32 %s154, 1
    %p158 = scmp.eq.s32.totalorder %s15, 2
    %p159 = scmp.ne.s32.totalorder %s154, %s156
    %p160 = scmp.eq.s32.totalorder %s15, 0
    %p161 = por %p159, %p160
    %p162 = scmp.ne.s32.totalorder %s154, %s156
    %p163 = scmp.eq.s32.totalorder %s20, 2
    %p164 = por %p162, %p163
    %p165 = scmp.ne.s32.totalorder %s156, %s157
    %p166 = scmp.eq.s32.totalorder %s20, 0
    %p167 = por %p165, %p166
    %p168 = scmp.ne.s32.totalorder %s156, %s157
    %p169 = scmp.eq.s32.totalorder %s21, 2
    %p170 = por %p168, %p169
    %p172 = scmp.ne.s32.totalorder %s157, %s171
    %p173 = scmp.eq.s32.totalorder %s21, 0
    %p174 = por %p172, %p173
    %s175 = ssub.s32 %s15, %s22
    %p176 = scmp.eq.s32.totalorder %s175, 0
    %s178 = sadd.s32 %s177, 1
    %s179 = scalar_select %p176, %s177, %s178
    %p182 = pneg %p176
    %p183 = scmp.eq.s32.totalorder %s15, 2
    %p184 = por %p182, %p183
    %p185 = scmp.ne.s32.totalorder %s177, %s180
    %p186 = scmp.eq.s32.totalorder %s15, 0
    %p187 = por %p185, %p186
    %p188 = scmp.ne.s32.totalorder %s177, %s180
    %p189 = scmp.eq.s32.totalorder %s20, 2
    %p190 = por %p188, %p189
    %p191 = scmp.ne.s32.totalorder %s180, %s181
    %p192 = scmp.eq.s32.totalorder %s20, 0
    %p193 = por %p191, %p192
    %p194 = scmp.ne.s32.totalorder %s180, %s181
    %p195 = scmp.eq.s32.totalorder %s21, 2
    %p196 = por %p194, %p195
    %p198 = scmp.ne.s32.totalorder %s181, %s197
    %p199 = scmp.eq.s32.totalorder %s21, 0
    %p200 = por %p198, %p199
    %p201 = scmp.le.s32.totalorder 1, %s15
    %p202 = scmp.lt.s32.totalorder %s15, 4
    %p203 = pnand %p201, %p202
    %p204 = pneg %p203
    // Predicated region
    $region9: #{logistic_model_forward.1} parent=5 // pred_check
      _
    $region10: #{logistic_model_forward.1} parent=5 // pred_check_branch
      %206 = sbr.rel (%p203) target = $region12
    $region11: #{logistic_model_forward.1} parent=5 // pred_region
      %s207 = ssub.s32 %s15, 1
      // Predicated region
      $region13: #{logistic_model_forward.1} parent=11 // pred_check
        %p208 = pneg %p62
      $region14: #{logistic_model_forward.1} parent=11 // pred_check_branch
        %210 = sbr.rel (%p208) target = $region16
      $region15: #{logistic_model_forward.1} parent=11 // pred_region
        _
      $region16: #{logistic_model_forward.1} parent=11 // pred_fallthru
        _
      // Predicated region
      $region17: #{logistic_model_forward.1} parent=11 // pred_check
        %p211 = pneg %p83
      $region18: #{logistic_model_forward.1} parent=11 // pred_check_branch
        %213 = sbr.rel (%p211) target = $region20
      $region19: #{logistic_model_forward.1} parent=11 // pred_region
        _
      $region20: #{logistic_model_forward.1} parent=11 // pred_fallthru
        _
      // Predicated region
      $region21: #{logistic_model_forward.1} parent=11 // pred_check
        %p214 = pneg %p104
      $region22: #{logistic_model_forward.1} parent=11 // pred_check_branch
        %216 = sbr.rel (%p214) target = $region24
      $region23: #{logistic_model_forward.1} parent=11 // pred_region
        _
      $region24: #{logistic_model_forward.1} parent=11 // pred_fallthru
        _
      // Predicated region
      $region25: #{logistic_model_forward.1} parent=11 // pred_check
        %p217 = pneg %p125
      $region26: #{logistic_model_forward.1} parent=11 // pred_check_branch
        %219 = sbr.rel (%p217) target = $region28
      $region27: #{logistic_model_forward.1} parent=11 // pred_region
        _
      $region28: #{logistic_model_forward.1} parent=11 // pred_fallthru
        _
      // Predicated region
      $region29: #{logistic_model_forward.1} parent=11 // pred_check
        %p220 = pneg %p146
      $region30: #{logistic_model_forward.1} parent=11 // pred_check_branch
        %222 = sbr.rel (%p220) target = $region32
      $region31: #{logistic_model_forward.1} parent=11 // pred_region
        _
      $region32: #{logistic_model_forward.1} parent=11 // pred_fallthru
        _
      // Predicated region
      $region33: #{logistic_model_forward.1} parent=11 // pred_check
        %p223 = pneg %p167
      $region34: #{logistic_model_forward.1} parent=11 // pred_check_branch
        %225 = sbr.rel (%p223) target = $region36
      $region35: #{logistic_model_forward.1} parent=11 // pred_region
        _
      $region36: #{logistic_model_forward.1} parent=11 // pred_fallthru
        _
    $region12: #{logistic_model_forward.1} parent=5 // pred_fallthru
      _
    %p226 = scmp.lt.s32.totalorder %s15, 3
    // Predicated region
    $region37: #{logistic_model_forward.1} parent=5 // pred_check
      %p227 = pneg %p226
    $region38: #{logistic_model_forward.1} parent=5 // pred_check_branch
      %229 = sbr.rel (%p227) target = $region40
    $region39: #{logistic_model_forward.1} parent=5 // pred_region
      // Predicated region
      $region41: #{logistic_model_forward.1} parent=39 // pred_check
        %p230 = pneg %p35
      $region42: #{logistic_model_forward.1} parent=39 // pred_check_branch
        %232 = sbr.rel (%p230) target = $region44
      $region43: #{logistic_model_forward.1} parent=39 // pred_region
        %p233 = scmp.lt.s32.totalorder %s15, 2
        %s234 = scalar_select %p233, %s15, 2
        %s235 = smul.addr %s234, 8
        %s236 = scalar_lea.vmem %s0, %s235
      $region44: #{logistic_model_forward.1} parent=39 // pred_fallthru
        _
    $region40: #{logistic_model_forward.1} parent=5 // pred_fallthru
      _
    %p237 = scmp.le.s32.totalorder 1, %s15
    %p238 = scmp.lt.s32.totalorder %s15, 4
    %p239 = pnand %p237, %p238
    %p240 = pneg %p239
    // Predicated region
    $region45: #{logistic_model_forward.1} parent=5 // pred_check
      _
    $region46: #{logistic_model_forward.1} parent=5 // pred_check_branch
      %242 = sbr.rel (%p239) target = $region48
    $region47: #{logistic_model_forward.1} parent=5 // pred_region
      %s243 = ssub.s32 %s15, 1
      %p244 = scmp.lt.s32.totalorder %s20, 2
      %s245 = scalar_select %p244, %s20, 2
      %s246 = smul.addr %s245, 8
      %s247 = scalar_lea.vmem %s0, %s246
      %p248 = pneg %p41
      %p249 = pneg %p38
      %p250 = pneg %p62
      %p251 = pneg %p59
      %p252 = pneg %p83
      %p253 = pneg %p80
      %p254 = pneg %p104
      %p255 = pneg %p101
      %p256 = pneg %p125
      %p257 = pneg %p122
      %p258 = pneg %p146
      %p259 = pneg %p143
      %p260 = pneg %p167
      %p261 = pneg %p164
      %p262 = pneg %p193
      %p263 = pneg %p190
      %p264 = scmp.lt.s32.totalorder %s20, 2
      %s265 = scalar_select %p264, %s20, 2
      %s266 = scalar_lea.vmem %s7, %s265
      %p267 = scmp.lt.s32.totalorder %s20, 2
      %s268 = scalar_select %p267, %s20, 2
      %s269 = smul.addr %s268, 8
      %s270 = scalar_lea.vmem %s0, %s269
      %p271 = scmp.lt.s32.totalorder %s20, 2
      %s272 = scalar_select %p271, %s20, 2
      %s273 = scalar_lea.vmem %s7, %s272
      %v274 = vld [vmem:[%s270] sm:$0xff]
      %v275 = vld [vmem:[%s1] sm:$0xff]
      %v276 = vld [vmem:[%s1 + $0x8] sm:$0xff]
      %v277 = vld [vmem:[%s1 + $0x10] sm:$0xff]
      %v278 = vld [vmem:[%s1 + $0x18] sm:$0xff]
      %v279 = vld [vmem:[%s1 + $0x20] sm:$0xff]
      %v280 = vld [vmem:[%s1 + $0x28] sm:$0xff]
      %v281 = vld [vmem:[%s1 + $0x30] sm:$0x3]
      %v282 = vld [vmem:[%s2] sm:$0xff]
      %v283 = vld [vmem:[%s2 + $0x8] sm:$0xff]
      %v284 = vld [vmem:[%s2 + $0x10] sm:$0xff]
      %v285 = vld [vmem:[%s2 + $0x18] sm:$0xff]
      %v286 = vld [vmem:[%s2 + $0x20] sm:$0xff]
      %v287 = vld [vmem:[%s2 + $0x28] sm:$0xff]
      %v288 = vld [vmem:[%s2 + $0x30] sm:$0x3]
      %290 = vset.pattern.permute.xlu0 0
      %291 = vperm.xlu0 %290, %v282
      %v292 = vpop.permute.xlu0 %291
      %295 = vset.pattern.permute.xlu0 0
      %296 = vperm.xlu0 %295, %v283
      %v297 = vpop.permute.xlu0 %296
      %300 = vset.pattern.permute.xlu0 0
      %301 = vperm.xlu0 %300, %v284
      %v302 = vpop.permute.xlu0 %301
      %305 = vset.pattern.permute.xlu0 0
      %306 = vperm.xlu0 %305, %v285
      %v307 = vpop.permute.xlu0 %306
      %310 = vset.pattern.permute.xlu0 0
      %311 = vperm.xlu0 %310, %v286
      %v312 = vpop.permute.xlu0 %311
      %315 = vset.pattern.permute.xlu0 0
      %316 = vperm.xlu0 %315, %v287
      %v317 = vpop.permute.xlu0 %316
      %320 = vset.pattern.permute.xlu0 0
      %321 = vperm.xlu0 %320, %v288
      %v322 = vpop.permute.xlu0 %321
      %vm324 = vcmask 64512
      %v326 = vsel %vm324, %v275, 0
      %v329 = vsel %vm324, %v276, 0
      %v332 = vsel %vm324, %v277, 0
      %v335 = vsel %vm324, %v278, 0
      %v338 = vsel %vm324, %v279, 0
      %v341 = vsel %vm324, %v280, 0
      %v344 = vsel %vm324, %v281, 0
      %346 = vmatprep.subr.mxu0 0.0
      %347 = vmatpush1.msra.mxu0 %v274
      %348 = vmatprep.subr.mxu0 0.0
      %349 = vmatpush1.msra.mxu0 0.0
      %350 = vmatprep.subr.mxu0 0.0
      %351 = vmatpush1.msra.mxu0 0.0
      %352 = vmatprep.subr.mxu0 0.0
      %353 = vmatpush1.msra.mxu0 0.0
      %354 = vmatprep.subr.mxu0 0.0
      %355 = vmatpush1.msra.mxu0 0.0
      %356 = vmatprep.subr.mxu0 0.0
      %357 = vmatpush1.msra.mxu0 0.0
      %358 = vmatprep.subr.mxu0 0.0
      %359 = vmatpush1.msra.mxu0 0.0
      %360 = vmatprep.subr.mxu0 0.0
      %361 = vmatpush1.msra.mxu0 0.0
      %362 = vmatprep.subr.mxu0 0.0
      %363 = vmatpush1.msra.mxu0 0.0
      %364 = vmatprep.subr.mxu0 0.0
      %365 = vmatpush1.msra.mxu0 0.0
      %366 = vmatprep.subr.mxu0 0.0
      %367 = vmatpush1.msra.mxu0 0.0
      %368 = vmatprep.subr.mxu0 0.0
      %369 = vmatpush1.msra.mxu0 0.0
      %370 = vmatprep.subr.mxu0 0.0
      %371 = vmatpush1.msra.mxu0 0.0
      %372 = vmatprep.subr.mxu0 0.0
      %373 = vmatpush1.msra.mxu0 0.0
      %374 = vmatprep.subr.mxu0 0.0
      %375 = vmatpush1.msra.mxu0 0.0
      %376 = vmatprep.subr.mxu0 0.0
      %377 = vmatpush1.msra.mxu0 0.0
      %378 = vmatprep.subr.mxu0 0.0
      %379 = vmatpush1.msra.mxu0 0.0
      %380 = vmatprep.subr.mxu0 0.0
      %381 = vmatpush1.msra.mxu0 0.0
      %382 = vmatprep.subr.mxu0 0.0
      %383 = vmatpush1.msra.mxu0 0.0
      %384 = vmatprep.subr.mxu0 0.0
      %385 = vmatpush1.msra.mxu0 0.0
      %386 = vmatprep.subr.mxu0 0.0
      %387 = vmatpush1.msra.mxu0 0.0
      %388 = vmatprep.subr.mxu0 0.0
      %389 = vmatpush1.msra.mxu0 0.0
      %390 = vmatprep.subr.mxu0 0.0
      %391 = vmatpush1.msra.mxu0 0.0
      %392 = vmatprep.subr.mxu0 0.0
      %393 = vmatpush1.msra.mxu0 0.0
      %394 = vmatprep.subr.mxu0 0.0
      %395 = vmatpush1.msra.mxu0 0.0
      %396 = vmatprep.subr.mxu0 0.0
      %397 = vmatpush1.msra.mxu0 0.0
      %398 = vmatprep.subr.mxu0 0.0
      %399 = vmatpush1.msra.mxu0 0.0
      %400 = vmatprep.subr.mxu0 0.0
      %401 = vmatpush1.msra.mxu0 0.0
      %402 = vmatprep.subr.mxu0 0.0
      %403 = vmatpush1.msra.mxu0 0.0
      %404 = vmatprep.subr.mxu0 0.0
      %405 = vmatpush1.msra.mxu0 0.0
      %406 = vmatprep.subr.mxu0 0.0
      %407 = vmatpush1.msra.mxu0 0.0
      %408 = vmatprep.subr.mxu0 0.0
      %409 = vmatpush1.msra.mxu0 0.0
      %410 = vmatprep.mubr.f32.mxu0 0.0
      %411 = vmatmul.mubr.f32.gmra.mrb[0].mxu0 %v326
      %v412 = vpop.f32.mrb[0].mxu0
      %v413 = vadd.f32 %v292, %v412
      %v414 = vpop.f32.mrb[0].mxu0
      %415 = vmatprep.mubr.f32.mxu0 0.0
      %416 = vmatmul.mubr.f32.gmra.mrb[0].mxu0 %v329
      %v417 = vpop.f32.mrb[0].mxu0
      %v418 = vadd.f32 %v297, %v417
      %v419 = vpop.f32.mrb[0].mxu0
      %420 = vmatprep.mubr.f32.mxu0 0.0
      %421 = vmatmul.mubr.f32.gmra.mrb[0].mxu0 %v332
      %v422 = vpop.f32.mrb[0].mxu0
      %v423 = vadd.f32 %v302, %v422
      %v424 = vpop.f32.mrb[0].mxu0
      %425 = vmatprep.mubr.f32.mxu0 0.0
      %426 = vmatmul.mubr.f32.gmra.mrb[0].mxu0 %v335
      %v427 = vpop.f32.mrb[0].mxu0
      %v428 = vadd.f32 %v307, %v427
      %v429 = vpop.f32.mrb[0].mxu0
      %430 = vmatprep.mubr.f32.mxu0 0.0
      %431 = vmatmul.mubr.f32.gmra.mrb[0].mxu0 %v338
      %v432 = vpop.f32.mrb[0].mxu0
      %v433 = vadd.f32 %v312, %v432
      %v434 = vpop.f32.mrb[0].mxu0
      %435 = vmatprep.mubr.f32.mxu0 0.0
      %436 = vmatmul.mubr.f32.gmra.mrb[0].mxu0 %v341
      %v437 = vpop.f32.mrb[0].mxu0
      %v438 = vadd.f32 %v317, %v437
      %v439 = vpop.f32.mrb[0].mxu0
      %440 = vmatprep.mubr.f32.mxu0 0.0
      %441 = vmatmul.mubr.f32.gmra.mrb[0].mxu0 %v344
      %v442 = vpop.f32.mrb[0].mxu0
      %v443 = vadd.f32 %v322, %v442
      %v444 = vpop.f32.mrb[0].mxu0
      %445 = vdwg.mxu0
      %v446 = vsub.f32 0.0, %v413
      %v447 = vsub.f32 0.0, %v418
      %v448 = vsub.f32 0.0, %v423
      %v449 = vsub.f32 0.0, %v428
      %v450 = vsub.f32 0.0, %v433
      %v451 = vsub.f32 0.0, %v438
      %v452 = vsub.f32 0.0, %v443
      %v453 = vmul.f32 %v446, 1.442695
      %v454 = vpow.pop %v453
      %v455 = vmul.f32 %v447, 1.442695
      %v456 = vpow.pop %v455
      %v457 = vmul.f32 %v448, 1.442695
      %v458 = vpow.pop %v457
      %v459 = vmul.f32 %v449, 1.442695
      %v460 = vpow.pop %v459
      %v461 = vmul.f32 %v450, 1.442695
      %v462 = vpow.pop %v461
      %v463 = vmul.f32 %v451, 1.442695
      %v464 = vpow.pop %v463
      %v465 = vmul.f32 %v452, 1.442695
      %v466 = vpow.pop %v465
      %v467 = vadd.f32 %v454, 1.0
      %v468 = vadd.f32 %v456, 1.0
      %v469 = vadd.f32 %v458, 1.0
      %v470 = vadd.f32 %v460, 1.0
      %v471 = vadd.f32 %v462, 1.0
      %v472 = vadd.f32 %v464, 1.0
      %v473 = vadd.f32 %v466, 1.0
      %v474 = vrcp.pop %v467
      %v475 = vrcp.pop %v468
      %v476 = vrcp.pop %v469
      %v477 = vrcp.pop %v470
      %v478 = vrcp.pop %v471
      %v479 = vrcp.pop %v472
      %v480 = vrcp.pop %v473
      %v481 = vld [vmem:[%s3] sm:$0xff]
      %v482 = vld [vmem:[%s3 + $0x8] sm:$0x3]
      %v483 = vld [vmem:[%s4] sm:$0xff]
      %v484 = vld [vmem:[%s4 + $0x8] sm:$0x3]
      %486 = vset.pattern.permute.xlu0 0
      %487 = vperm.xlu0 %486, %v483
      %v488 = vpop.permute.xlu0 %487
      %491 = vset.pattern.permute.xlu0 0
      %492 = vperm.xlu0 %491, %v484
      %v493 = vpop.permute.xlu0 %492
      %vm495 = vcmask 408576
      %v497 = vsel %vm495, %v481, 0
      %v500 = vsel %vm495, %v482, 0
      %vm502 = vcmask 1041408
      %v504 = vsel %vm502, %v480, 0
      %506 = vmatprep.subr.mxu0 0.0
      %507 = vmatpush1.msra.mxu0 %v474
      %508 = vmatprep.subr.mxu0 0.0
      %509 = vmatpush1.msra.mxu0 %v475
      %510 = vmatprep.subr.mxu0 0.0
      %511 = vmatpush1.msra.mxu0 %v476
      %512 = vmatprep.subr.mxu0 0.0
      %513 = vmatpush1.msra.mxu0 %v477
      %514 = vmatprep.subr.mxu0 0.0
      %515 = vmatpush1.msra.mxu0 %v478
      %516 = vmatprep.subr.mxu0 0.0
      %517 = vmatpush1.msra.mxu0 %v479
      %518 = vmatprep.subr.mxu0 0.0
      %519 = vmatpush1.msra.mxu0 %v504
      %520 = vmatprep.subr.mxu0 0.0
      %521 = vmatpush1.msra.mxu0 0.0
      %522 = vmatprep.subr.mxu0 0.0
      %523 = vmatpush1.msra.mxu0 0.0
      %524 = vmatprep.subr.mxu0 0.0
      %525 = vmatpush1.msra.mxu0 0.0
      %526 = vmatprep.subr.mxu0 0.0
      %527 = vmatpush1.msra.mxu0 0.0
      %528 = vmatprep.subr.mxu0 0.0
      %529 = vmatpush1.msra.mxu0 0.0
      %530 = vmatprep.subr.mxu0 0.0
      %531 = vmatpush1.msra.mxu0 0.0
      %532 = vmatprep.subr.mxu0 0.0
      %533 = vmatpush1.msra.mxu0 0.0
      %534 = vmatprep.subr.mxu0 0.0
      %535 = vmatpush1.msra.mxu0 0.0
      %536 = vmatprep.subr.mxu0 0.0
      %537 = vmatpush1.msra.mxu0 0.0
      %538 = vmatprep.subr.mxu0 0.0
      %539 = vmatpush1.msra.mxu0 0.0
      %540 = vmatprep.subr.mxu0 0.0
      %541 = vmatpush1.msra.mxu0 0.0
      %542 = vmatprep.subr.mxu0 0.0
      %543 = vmatpush1.msra.mxu0 0.0
      %544 = vmatprep.subr.mxu0 0.0
      %545 = vmatpush1.msra.mxu0 0.0
      %546 = vmatprep.subr.mxu0 0.0
      %547 = vmatpush1.msra.mxu0 0.0
      %548 = vmatprep.subr.mxu0 0.0
      %549 = vmatpush1.msra.mxu0 0.0
      %550 = vmatprep.subr.mxu0 0.0
      %551 = vmatpush1.msra.mxu0 0.0
      %552 = vmatprep.subr.mxu0 0.0
      %553 = vmatpush1.msra.mxu0 0.0
      %554 = vmatprep.subr.mxu0 0.0
      %555 = vmatpush1.msra.mxu0 0.0
      %556 = vmatprep.subr.mxu0 0.0
      %557 = vmatpush1.msra.mxu0 0.0
      %558 = vmatprep.subr.mxu0 0.0
      %559 = vmatpush1.msra.mxu0 0.0
      %560 = vmatprep.subr.mxu0 0.0
      %561 = vmatpush1.msra.mxu0 0.0
      %562 = vmatprep.subr.mxu0 0.0
      %563 = vmatpush1.msra.mxu0 0.0
      %564 = vmatprep.subr.mxu0 0.0
      %565 = vmatpush1.msra.mxu0 0.0
      %566 = vmatprep.subr.mxu0 0.0
      %567 = vmatpush1.msra.mxu0 0.0
      %568 = vmatprep.subr.mxu0 0.0
      %569 = vmatpush1.msra.mxu0 0.0
      %570 = vmatprep.mubr.f32.mxu0 0.0
      %571 = vmatmul.mubr.f32.gmra.mrb[0].mxu0 %v497
      %v572 = vpop.f32.mrb[0].mxu0
      %v573 = vadd.f32 %v488, %v572
      %v574 = vpop.f32.mrb[0].mxu0
      %575 = vmatprep.mubr.f32.mxu0 0.0
      %576 = vmatmul.mubr.f32.gmra.mrb[0].mxu0 %v500
      %v577 = vpop.f32.mrb[0].mxu0
      %v578 = vadd.f32 %v493, %v577
      %v579 = vpop.f32.mrb[0].mxu0
      %580 = vdwg.mxu0
      %v581 = vsub.f32 0.0, %v573
      %v582 = vsub.f32 0.0, %v578
      %v583 = vmul.f32 %v581, 1.442695
      %v584 = vpow.pop %v583
      %v585 = vmul.f32 %v582, 1.442695
      %v586 = vpow.pop %v585
      %v587 = vadd.f32 %v584, 1.0
      %v588 = vadd.f32 %v586, 1.0
      %v589 = vrcp.pop %v587
      %v590 = vrcp.pop %v588
      %v591 = vld [vmem:[%s5] sm:$0x1]
      %v592 = vld [vmem:[#allocation2] sm:$0x1]
      %594 = vset.pattern.permute.xlu0 0
      %595 = vperm.xlu0 %594, %v592
      %v596 = vpop.permute.xlu0 %595
      %v598 = vlaneseq
      %v599 = vshrl.u32 %v598, 7
      %v600 = vsub.s32 0, %v599
      %v601 = vrot.slane %v596, %v600
      %vm602 = vcmask 80896
      %v604 = vsel %vm602, %v591, 0
      %v607 = vsel %vm502, %v590, 0
      %609 = vmatprep.subr.mxu0 0.0
      %610 = vmatpush1.msra.mxu0 %v589
      %611 = vmatprep.subr.mxu0 0.0
      %612 = vmatpush1.msra.mxu0 %v607
      %613 = vmatprep.subr.mxu0 0.0
      %614 = vmatpush1.msra.mxu0 0.0
      %615 = vmatprep.subr.mxu0 0.0
      %616 = vmatpush1.msra.mxu0 0.0
      %617 = vmatprep.subr.mxu0 0.0
      %618 = vmatpush1.msra.mxu0 0.0
      %619 = vmatprep.subr.mxu0 0.0
      %620 = vmatpush1.msra.mxu0 0.0
      %621 = vmatprep.subr.mxu0 0.0
      %622 = vmatpush1.msra.mxu0 0.0
      %623 = vmatprep.subr.mxu0 0.0
      %624 = vmatpush1.msra.mxu0 0.0
      %625 = vmatprep.subr.mxu0 0.0
      %626 = vmatpush1.msra.mxu0 0.0
      %627 = vmatprep.subr.mxu0 0.0
      %628 = vmatpush1.msra.mxu0 0.0
      %629 = vmatprep.subr.mxu0 0.0
      %630 = vmatpush1.msra.mxu0 0.0
      %631 = vmatprep.subr.mxu0 0.0
      %632 = vmatpush1.msra.mxu0 0.0
      %633 = vmatprep.subr.mxu0 0.0
      %634 = vmatpush1.msra.mxu0 0.0
      %635 = vmatprep.subr.mxu0 0.0
      %636 = vmatpush1.msra.mxu0 0.0
      %637 = vmatprep.subr.mxu0 0.0
      %638 = vmatpush1.msra.mxu0 0.0
      %639 = vmatprep.subr.mxu0 0.0
      %640 = vmatpush1.msra.mxu0 0.0
      %641 = vmatprep.subr.mxu0 0.0
      %642 = vmatpush1.msra.mxu0 0.0
      %643 = vmatprep.subr.mxu0 0.0
      %644 = vmatpush1.msra.mxu0 0.0
      %645 = vmatprep.subr.mxu0 0.0
      %646 = vmatpush1.msra.mxu0 0.0
      %647 = vmatprep.subr.mxu0 0.0
      %648 = vmatpush1.msra.mxu0 0.0
      %649 = vmatprep.subr.mxu0 0.0
      %650 = vmatpush1.msra.mxu0 0.0
      %651 = vmatprep.subr.mxu0 0.0
      %652 = vmatpush1.msra.mxu0 0.0
      %653 = vmatprep.subr.mxu0 0.0
      %654 = vmatpush1.msra.mxu0 0.0
      %655 = vmatprep.subr.mxu0 0.0
      %656 = vmatpush1.msra.mxu0 0.0
      %657 = vmatprep.subr.mxu0 0.0
      %658 = vmatpush1.msra.mxu0 0.0
      %659 = vmatprep.subr.mxu0 0.0
      %660 = vmatpush1.msra.mxu0 0.0
      %661 = vmatprep.subr.mxu0 0.0
      %662 = vmatpush1.msra.mxu0 0.0
      %663 = vmatprep.subr.mxu0 0.0
      %664 = vmatpush1.msra.mxu0 0.0
      %665 = vmatprep.subr.mxu0 0.0
      %666 = vmatpush1.msra.mxu0 0.0
      %667 = vmatprep.subr.mxu0 0.0
      %668 = vmatpush1.msra.mxu0 0.0
      %669 = vmatprep.subr.mxu0 0.0
      %670 = vmatpush1.msra.mxu0 0.0
      %671 = vmatprep.subr.mxu0 0.0
      %672 = vmatpush1.msra.mxu0 0.0
      %673 = vmatprep.mubr.f32.mxu0 0.0
      %674 = vmatmul.mubr.f32.gmra.mrb[0].mxu0 %v604
      %v675 = vpop.f32.mrb[0].mxu0
      %v676 = vadd.f32 %v601, %v675
      %v677 = vpop.f32.mrb[0].mxu0
      %678 = vdwg.mxu0
      %v679 = vsub.f32 0.0, %v676
      %v680 = vmul.f32 %v679, 1.442695
      %v681 = vpow.pop %v680
      %v682 = vadd.f32 %v681, 1.0
      %v683 = vrcp.pop %v682
      %684 = vst [vmem:[%s273] sm:$0x1] %v683
      %p685 = scmp.lt.s32.totalorder %s20, 2
      %s686 = scalar_select %p685, %s20, 2
      %s687 = scalar_lea.vmem %s7, %s686
      // Predicated region
      $region49: #{logistic_model_forward.1} parent=47 // pred_check
        %p688 = pneg %p190
      $region50: #{logistic_model_forward.1} parent=47 // pred_check_branch
        %690 = sbr.rel (%p688) target = $region52
      $region51: #{logistic_model_forward.1} parent=47 // pred_region
        _
      $region52: #{logistic_model_forward.1} parent=47 // pred_fallthru
        _
    $region48: #{logistic_model_forward.1} parent=5 // pred_fallthru
      _
    %p691 = scmp.le.s32.totalorder 2, %s15
    // Predicated region
    $region53: #{logistic_model_forward.1} parent=5 // pred_check
      %p692 = pneg %p691
    $region54: #{logistic_model_forward.1} parent=5 // pred_check_branch
      %694 = sbr.rel (%p692) target = $region56
    $region55: #{logistic_model_forward.1} parent=5 // pred_region
      %s695 = ssub.s32 %s15, 2
      // Predicated region
      $region57: #{logistic_model_forward.1} parent=55 // pred_check
        %p696 = pneg %p196
      $region58: #{logistic_model_forward.1} parent=55 // pred_check_branch
        %698 = sbr.rel (%p696) target = $region60
      $region59: #{logistic_model_forward.1} parent=55 // pred_region
        %p699 = scmp.lt.s32.totalorder %s21, 2
        %s700 = scalar_select %p699, %s21, 2
        %s701 = scalar_lea.vmem %s7, %s700
      $region60: #{logistic_model_forward.1} parent=55 // pred_fallthru
        _
    $region56: #{logistic_model_forward.1} parent=5 // pred_fallthru
      _
  $region6: #{logistic_model_forward.1} parent=0 // loop_footer
    %s19 = sadd.s32 1, %s15
  $region7: #{logistic_model_forward.1} parent=0 // loop_footer_branch
    %14 = sbr.rel target = $region3
  $region8: #{logistic_model_forward.1} parent=0 // loop_exit
    _

</llo_original>
